<compile_context>
chip_gen: v7x
topology: tpu7x:2x2x1
jax: 0.10.0
libtpu: 0.0.40
codegen_flags: <defaults>
</compile_context>

<pallas_src>
import math

import jax
import jax.numpy as jnp
from jax.experimental import pallas as pl
from jax.experimental.pallas import tpu as pltpu

TEMPERATURE = 0.33
LOW, HIGH = -0.1, 1.1
EPS = 1e-6
_MIB = 1 << 20


# ------------------------------ kernel --------------------------------------

def _apply_gate_kernel(values_ref, gates_ref, out_ref):
    """out = values * gates; the (1, Hp) gate row broadcasts over the (TILE_R, Hp) tile.

    Both operands arrive pre-cast to the output dtype, so the body is a single
    native-dtype VPU multiply + unmasked lane-dense store (no per-element casts
    in the streamed path).
    """
    out_ref[...] = values_ref[...] * gates_ref[...]


# ------------------------------ helpers -------------------------------------

def _compute_gates_row(log_a_row, noise_row=None):
    """Gate row (1, H) in float32 -- parameter-shaped O(H) work, plain jnp."""
    if noise_row is None:
        concrete = jax.nn.sigmoid(log_a_row)
    else:
        logits = (jnp.log(noise_row) - jnp.log(1.0 - noise_row) + log_a_row) / TEMPERATURE
        concrete = jax.nn.sigmoid(logits)
    return jnp.clip(concrete * (HIGH - LOW) + LOW, 0.0, 1.0)


def _lane_dense_fold(rows, hidden, target_hp=4096):
    """Fold rows into the lane axis so the kernel's last dim is a multiple of 128.

    Returns (folded_rows, folded_hidden, reps) such that
    values.reshape(folded_rows, folded_hidden) preserves flat order and the gate
    row tiled `reps` times along the lane axis matches element-for-element.
    Returns None if no exact fold exists (caller pads instead).
    """
    if hidden % 128 == 0:
        base = 1
    else:
        base = 128 // math.gcd(hidden, 128)
        if rows % base != 0:
            return None
    reps = base
    # Grow the lane width toward ~target_hp (wider unmasked stores, longer
    # contiguous DMA rows) while the fold stays exact.
    while hidden * reps * 2 <= target_hp and rows % (reps * 2) == 0:
        reps *= 2
    return rows // reps, hidden * reps, reps


def _vmem_budget():
    """Returns (per-buffer tile byte cap, vmem_limit_bytes), generation-aware."""
    vmem = None
    try:
        vmem = getattr(pltpu.get_tpu_info(), "vmem_capacity_bytes", None)
    except Exception:
        vmem = None
    if vmem is None:
        vmem = 64 * _MIB  # conservative default (v7x-sized VMEM)
    if vmem <= 64 * _MIB:
        # v7x: 64 MiB physical VMEM, 3.2 TB/s HBM -- big but bounded tiles.
        limit = min(52 * _MIB, int(vmem * 0.82))
        tile_cap = min(10 * _MIB, max(2 * _MIB, limit // 5))
    else:
        # v5e / v6e: 128 MiB physical VMEM; raise well above the scoped default.
        limit = 88 * _MIB
        tile_cap = 16 * _MIB
    return tile_cap, limit


def _choose_tile_rows(rows, hp, itemsize, max_tile_bytes):
    """Row-tile size: big tiles (few grid steps), sublane-aligned, and >=2 grid
    steps (even when possible) so the 'parallel' axis load-balances on megacore."""
    sublane = max(8, 32 // max(1, itemsize))  # f32 -> 8, bf16 -> 16, int8 -> 32
    bytes_per_row = max(1, hp * itemsize)
    max_rows = max(1, max_tile_bytes // bytes_per_row)
    steps = pl.cdiv(rows, min(rows, max_rows))
    if rows >= 2 * sublane and steps % 2 == 1:
        steps += 1
    tile = pl.cdiv(rows, steps)
    tile = ((tile + sublane - 1) // sublane) * sublane
    return min(rows, tile)


def _apply_gates(values, gates_row):
    """Single lane-dense, row-tiled streaming multiply: out = values * gates."""
    b, s, h = values.shape
    dtype = values.dtype
    itemsize = jnp.dtype(dtype).itemsize
    rows = b * s
    v2d = values.reshape(rows, h)

    fold = _lane_dense_fold(rows, h)
    if fold is not None:
        rows2, hp, reps = fold
        pad = 0
        v2 = v2d.reshape(rows2, hp)
        g2 = jnp.tile(gates_row, (1, reps)) if reps > 1 else gates_row
    else:
        # No exact fold: pad H up to the next multiple of 128 so stores stay
        # unmasked lane-dense; padded lanes are sliced off afterwards.
        rows2 = rows
        hp = pl.cdiv(h, 128) * 128
        pad = hp - h
        v2 = jnp.pad(v2d, ((0, 0), (0, pad)))
        g2 = jnp.pad(gates_row, ((0, 0), (0, pad)))
    g2 = g2.astype(dtype)  # native-dtype multiply inside the kernel

    max_tile_bytes, vmem_limit = _vmem_budget()
    tile_r = _choose_tile_rows(rows2, hp, itemsize, max_tile_bytes)
    grid = (pl.cdiv(rows2, tile_r),)

    out2 = pl.pallas_call(
        _apply_gate_kernel,
        out_shape=jax.ShapeDtypeStruct((rows2, hp), dtype),
        grid=grid,
        in_specs=[
            pl.BlockSpec((tile_r, hp), lambda i: (i, 0)),   # streamed values tile
            pl.BlockSpec((1, hp), lambda i: (0, 0)),        # gate row, VMEM-resident
        ],
        out_specs=pl.BlockSpec((tile_r, hp), lambda i: (i, 0)),
        compiler_params=pltpu.CompilerParams(
            dimension_semantics=("parallel",),
            vmem_limit_bytes=vmem_limit,
        ),
        cost_estimate=pl.CostEstimate(
            flops=int(rows2) * int(hp),
            transcendentals=0,
            bytes_accessed=2 * int(rows2) * int(hp) * int(itemsize) + int(hp) * int(itemsize),
        ),
    )(v2, g2)

    if pad:
        out2 = out2[:, :h]
    return out2.reshape(b, s, h)


# ------------------------------ public API ----------------------------------

def concrete_gate_forward(values, log_a, is_train=False, rng_key=None):
    """Forward pass of ConcreteGate.

    values : (B, S, H) array; log_a : (1, 1, H) gate parameter (broadcast over the
    leading axes).  In training mode a jax.random key must be supplied (a fresh
    key per step, so the stochastic gate actually varies across steps).

    Returns (gated_values, gates) with gates of shape (1, 1, H) in float32.
    """
    b, s, h = values.shape
    la_row = log_a.reshape(1, h).astype(jnp.float32)

    if is_train:
        if rng_key is None:
            raise ValueError("training mode requires an explicit jax.random key "
                             "(pass a fresh key per step)")
        u = jax.random.uniform(rng_key, (1, h), dtype=jnp.float32)
        noise_row = (1.0 - 2.0 * EPS) * u + EPS
        gates_row = _compute_gates_row(la_row, noise_row)
    else:
        gates_row = _compute_gates_row(la_row)

    out = _apply_gates(values, gates_row)
    return out, gates_row.reshape(1, 1, h)


# ------------------------------ self-test -----------------------------------

if __name__ == "__main__":
    key = jax.random.PRNGKey(0)
    B, S, H = 2, 8, 32  # batch, seq length, hidden units (gate shape = (1, 1, H))
    kv, kl, kn, kv2, kl2 = jax.random.split(key, 5)

    values = jax.random.normal(kv, (B, S, H), dtype=jnp.float32)

    # nn.init.xavier_uniform_ on shape (1, 1, H): fan_in = fan_out = H,
    # bound = sqrt(6 / (fan_in + fan_out)) = sqrt(3 / H)
    bound = (3.0 / H) ** 0.5
    log_a = jax.random.uniform(kl, (1, 1, H), minval=-bound, maxval=bound,
                               dtype=jnp.float32)

    # --- eval (deterministic) path vs pure-JAX reference ---
    out_eval, gates_eval = concrete_gate_forward(values, log_a, is_train=False)
    out_eval = jax.block_until_ready(out_eval)
    ref_gates_eval = jnp.clip(jax.nn.sigmoid(log_a) * (HIGH - LOW) + LOW, 0.0, 1.0)
    assert out_eval.shape == values.shape
    assert jnp.allclose(gates_eval, ref_gates_eval, atol=1e-5)
    assert jnp.allclose(out_eval, values * ref_gates_eval, atol=1e-5)

    # --- train (stochastic) path vs pure-JAX reference built from the same key ---
    out_train, gates_train = concrete_gate_forward(values, log_a, is_train=True,
                                                   rng_key=kn)
    out_train = jax.block_until_ready(out_train)
    gates_train = jax.block_until_ready(gates_train)

    u_ref = jax.random.uniform(kn, (1, H), dtype=jnp.float32)
    noise_ref = ((1.0 - 2.0 * EPS) * u_ref + EPS).reshape(1, 1, H)
    ref_gates_train = jnp.clip(
        jax.nn.sigmoid((jnp.log(noise_ref) - jnp.log(1.0 - noise_ref) + log_a)
                       / TEMPERATURE) * (HIGH - LOW) + LOW,
        0.0, 1.0)
    assert gates_train.shape == (1, 1, H)
    assert bool(jnp.all((gates_train >= 0.0) & (gates_train <= 1.0)))
    assert jnp.allclose(gates_train, ref_gates_train, atol=1e-5)
    assert jnp.allclose(out_train, values * gates_train, atol=1e-5)

    # --- awkward shape (hidden not foldable to a multiple of 128 -> pad path) ---
    B2, S2, H2 = 2, 7, 20
    values2 = jax.random.normal(kv2, (B2, S2, H2), dtype=jnp.float32)
    bound2 = (3.0 / H2) ** 0.5
    log_a2 = jax.random.uniform(kl2, (1, 1, H2), minval=-bound2, maxval=bound2,
                                dtype=jnp.float32)
    out2, gates2 = concrete_gate_forward(values2, log_a2, is_train=False)
    out2 = jax.block_until_ready(out2)
    ref_gates2 = jnp.clip(jax.nn.sigmoid(log_a2) * (HIGH - LOW) + LOW, 0.0, 1.0)
    assert out2.shape == values2.shape
    assert jnp.allclose(gates2, ref_gates2, atol=1e-5)
    assert jnp.allclose(out2, values2 * ref_gates2, atol=1e-5)

    print("KERNEL_OK")
</pallas_src>

<mosaic_0001>
module attributes {stable_mosaic.version = 11 : i64} {
  func.func @_apply_gate_kernel(%arg0: i32, %arg1: memref<1x512xf32, #tpu.memory_space<vmem>>, %arg2: memref<1x512xf32, #tpu.memory_space<vmem>>, %arg3: memref<1x512xf32, #tpu.memory_space<vmem>>) attributes {dimension_semantics = [#tpu.dimension_semantics<parallel>], iteration_bounds = array<i64: 1>, scalar_prefetch = 0 : i64, scratch_operands = 0 : i64, tpu.core_type = #tpu.core_type<tc>, window_params = [{transform_indices = @transform_0, window_bounds = array<i64: 1, 512>}, {pipeline_mode = #tpu.pipeline_mode<synchronous>, transform_indices = @transform_1, window_bounds = array<i64: 1, 512>}, {transform_indices = @transform_2, window_bounds = array<i64: 1, 512>}]} {
    %c0 = arith.constant 0 : index
    %c0_0 = arith.constant 0 : index
    %0 = vector.load %arg1[%c0, %c0_0] : memref<1x512xf32, #tpu.memory_space<vmem>>, vector<1x512xf32>
    %c0_1 = arith.constant 0 : index
    %c0_2 = arith.constant 0 : index
    %1 = vector.load %arg2[%c0_1, %c0_2] : memref<1x512xf32, #tpu.memory_space<vmem>>, vector<1x512xf32>
    %2 = arith.mulf %0, %1 : vector<1x512xf32>
    %c0_3 = arith.constant 0 : index
    %c0_4 = arith.constant 0 : index
    %3 = vector.load %arg3[%c0_3, %c0_4] : memref<1x512xf32, #tpu.memory_space<vmem>>, vector<1x512xf32>
    tpu.vector_store %arg3[%c0_3, %c0_4], %2 {strides = array<i32>} : memref<1x512xf32, #tpu.memory_space<vmem>>, vector<1x512xf32>,
    return
  }
  func.func @transform_0(%arg0: i32) -> (i32, i32) {
    %c0_i32 = arith.constant 0 : i32
    %c0_i32_0 = arith.constant 0 : i32
    return %arg0, %c0_i32 : i32, i32
  }
  func.func @transform_1(%arg0: i32) -> (i32, i32) {
    %c0_i32 = arith.constant 0 : i32
    %c0_i32_0 = arith.constant 0 : i32
    %c0_i32_1 = arith.constant 0 : i32
    return %c0_i32, %c0_i32_0 : i32, i32
  }
  func.func @transform_2(%arg0: i32) -> (i32, i32) {
    %c0_i32 = arith.constant 0 : i32
    %c0_i32_0 = arith.constant 0 : i32
    return %arg0, %c0_i32 : i32, i32
  }
}

</mosaic_0001>

<llo_original>
// kernel: tpu_custom_call.1
$region0: #{tpu_custom_call.1}
  #allocation0 [shape = 'u32[]', space=smem, size = 0x4, offset = 0x4, fixed_abs, tag = 'smem constant byte address 0x4 - core index']
  #allocation1 [shape = 'u32[144,128]{1,0:T(1,128)}', space=vmem, size = 0x12000, scoped, tag = 'internal scratch']
  %s0 = inlined_call_operand.hbm [shape: f32[1,512], index: 0, kind: input, shape index: {}]
  %s1 = inlined_call_operand.hbm [shape: f32[1,512], index: 1, kind: input, shape index: {}]
  %s2 = inlined_call_operand.hbm [shape: f32[1,512], index: 2, kind: output, shape index: {}]
  %s3 = sld [smem:[#allocation0]]
  $region26: #{tpu_custom_call.1} parent=0
    _
  %s5 = ssub.s32 1, %s3
  %s6 = scalar_select 0, %s5, %s3
  $region1: #{tpu_custom_call.1} parent=0
    #allocation2 [shape = 'u8[2048]{0}', space=vmem, size = 0x800, scoped, tag = 'input window, operand 0, single buffered']
    #allocation3 [shape = 's32[1]{0}', space=sflag, size = 0x4, scoped, tag = 'scoped memory for tpu_custom_call.1']
    #allocation4 [shape = 's32[1]{0}', space=sflag, size = 0x4, scoped, tag = 'scoped memory for tpu_custom_call.1']
    #allocation5 [shape = 'u8[2048]{0}', space=vmem, size = 0x800, scoped, tag = 'input window, operand 1, single buffered']
    #allocation6 [shape = 's32[1]{0}', space=sflag, size = 0x4, scoped, tag = 'scoped memory for tpu_custom_call.1']
    #allocation7 [shape = 'u8[2048]{0}', space=vmem, size = 0x800, scoped, tag = 'output window, operand 0, single buffered']
    %7 = vsyncpa [#allocation3], 0
    %8 = vsyncpa [#allocation6], 0
    %9 = vsyncpa [#allocation4], 0
    // Predicated region
    $region2: #{tpu_custom_call.1} parent=1 // pred_check
      _
    $region3: #{tpu_custom_call.1} parent=1 // pred_check_branch
      %11 = sbr.rel (0) target = $region5
    $region4: #{tpu_custom_call.1} parent=1 // pred_region
      %s13 = ssub.s32 64, 64
      %14 = vsyncadd [#allocation3], %s13
      %s16 = sshll.u32 [#allocation2], 4
      %s17 = int_to_ptr.vmem [resolvable:$true] %s16
      %19 = dma.hbm_to_vmem [thread:$0]  %s0, 64, %s17, [#allocation3]
    $region5: #{tpu_custom_call.1} parent=1 // pred_fallthru
      _
    // Predicated region
    $region6: #{tpu_custom_call.1} parent=1 // pred_check
      _
    $region7: #{tpu_custom_call.1} parent=1 // pred_check_branch
      %21 = sbr.rel (0) target = $region9
    $region8: #{tpu_custom_call.1} parent=1 // pred_region
      %s23 = ssub.s32 64, 64
      %24 = vsyncadd [#allocation6], %s23
      %s26 = sshll.u32 [#allocation5], 4
      %s27 = int_to_ptr.vmem [resolvable:$true] %s26
      %29 = dma.hbm_to_vmem [thread:$0]  %s1, 64, %s27, [#allocation6]
    $region9: #{tpu_custom_call.1} parent=1 // pred_fallthru
      _
    // Predicated region
    $region10: #{tpu_custom_call.1} parent=1 // pred_check
      _
    $region11: #{tpu_custom_call.1} parent=1 // pred_check_branch
      %31 = sbr.rel (0) target = $region13
    $region12: #{tpu_custom_call.1} parent=1 // pred_region
      %32 = dma.done [#allocation3], 64
    $region13: #{tpu_custom_call.1} parent=1 // pred_fallthru
      _
    // Predicated region
    $region14: #{tpu_custom_call.1} parent=1 // pred_check
      _
    $region15: #{tpu_custom_call.1} parent=1 // pred_check_branch
      %34 = sbr.rel (0) target = $region17
    $region16: #{tpu_custom_call.1} parent=1 // pred_region
      %35 = dma.done [#allocation6], 64
    $region17: #{tpu_custom_call.1} parent=1 // pred_fallthru
      _
    %v36 = vld [vmem:[#allocation2] sm:$0xf]
    %v37 = vld [vmem:[#allocation5] sm:$0xf]
    %v38 = vmul.f32 %v36, %v37
    %v39 = vlaneseq
    %vm40 = vcmp.ge.s32.totalorder %v39, 0
    %vm41 = vcmp.lt.s32.totalorder %v39, 512
    %vm42 = vmand %vm40, %vm41
    %43 = vst.msk [vmem:[#allocation7] sm:$0xf] %vm42, %v38
    // Predicated region
    $region18: #{tpu_custom_call.1} parent=1 // pred_check
      _
    $region19: #{tpu_custom_call.1} parent=1 // pred_check_branch
      %45 = sbr.rel (0) target = $region21
    $region20: #{tpu_custom_call.1} parent=1 // pred_region
      %s47 = ssub.s32 64, 64
      %48 = vsyncadd [#allocation4], %s47
      %s50 = sshll.u32 [#allocation7], 4
      %s51 = int_to_ptr.vmem [resolvable:$true] %s50
      %53 = dma.vmem_to_hbm [thread:$0]  %s51, 64, %s2, [#allocation4]
    $region21: #{tpu_custom_call.1} parent=1 // pred_fallthru
      _
    // Predicated region
    $region22: #{tpu_custom_call.1} parent=1 // pred_check
      _
    $region23: #{tpu_custom_call.1} parent=1 // pred_check_branch
      %55 = sbr.rel (0) target = $region25
    $region24: #{tpu_custom_call.1} parent=1 // pred_region
      %56 = dma.done [#allocation4], 64
    $region25: #{tpu_custom_call.1} parent=1 // pred_fallthru
      _
    %57 = vsyncpa [#allocation3], 1
    %58 = vsyncpa [#allocation6], 1
    %59 = vsyncpa [#allocation4], 1

</llo_original>
